<compile_context>
chip_gen: v7x
topology: tpu7x:2x2x1
jax: 0.10.0
libtpu: 0.0.40
codegen_flags: <defaults>
</compile_context>

<pallas_src>
from functools import partial

import numpy as np
import jax
import jax.numpy as jnp
from jax import lax
from jax.experimental import pallas as pl
from jax.experimental.pallas import tpu as pltpu

LANE = 128
SUBLANE = 8


def _round_up(x, m):
    return (x + m - 1) // m * m


def _vmem_limit_bytes():
    """~48 MiB on v7x (64 MiB physical VMEM), 64 MiB on v5e/v6e (128 MiB)."""
    try:
        cap = int(pltpu.get_tpu_info().vmem_capacity_bytes)
        return min(max(cap - 16 * 1024 * 1024, 16 * 1024 * 1024), 64 * 1024 * 1024)
    except Exception:
        return 48 * 1024 * 1024  # conservative fallback, safe on every generation


# ----------------------------- constant builders -----------------------------

def _build_pool_matrix(H, W, oh, ow):
    """AdaptiveAvgPool2d((oh, ow)) as an (oh*ow, H*W) averaging matrix (divisible case)."""
    assert H % oh == 0 and W % ow == 0
    bh, bw = H // oh, W // ow
    P = np.zeros((oh * ow, H * W), np.float32)
    for i in range(oh):
        for j in range(ow):
            for hh in range(i * bh, (i + 1) * bh):
                for ww in range(j * bw, (j + 1) * bw):
                    P[i * ow + j, hh * W + ww] = 1.0 / (bh * bw)
    return P


# ------------------------------- Pallas kernel --------------------------------

def _make_fused_kernel(BT, HW, KC, Cout_p, E_p, n_cells, eps=1e-8):
    """conv stem (one K=KC contraction) -> (4,4)&(1,1) pools -> l2norm -> fc -> l2norm."""

    def kernel(x_ref, wc_ref, bc_ref, p_ref, wf_ref, bf_ref, spat_ref, feat_ref):
        # x_ref:    (BT*HW, KC)          bf16 pre-shifted 3x3 patches (tap-major, ch-minor)
        # wc_ref:   (KC, Cout_p)         bf16 fused conv weight (out-channels padded to 128)
        # bc_ref:   (1, Cout_p)          f32  conv bias
        # p_ref:    (n_cells, HW)        bf16 AdaptiveAvgPool2d((4,4)) matrix
        # wf_ref:   (Cout_p, E_p)        bf16 fc weight [in, out], zero-padded
        # bf_ref:   (1, E_p)             f32  fc bias
        # spat_ref: (BT, n_cells, Cout_p) f32 spatial features (4x4 pooled)
        # feat_ref: (BT, 1, E_p)          f32 final l2-normalized embeddings

        # --- conv stem: ONE MXU matmul, M = BT*HW, K = 9*Cin --------------------
        feat = jnp.dot(x_ref[...], wc_ref[...],
                       preferred_element_type=jnp.float32)        # (BT*HW, Cout_p)
        feat = jnp.maximum(feat + bc_ref[...], 0.0)               # bias + ReLU (f32, VPU)
        featb = feat.astype(jnp.bfloat16)

        # --- adaptive average pools ---------------------------------------------
        pmat = p_ref[...]
        glob_rows = []
        for i in range(BT):                                       # static unroll, BT small
            fi = featb[i * HW:(i + 1) * HW, :]                    # (HW, Cout_p)
            pooled_i = jnp.dot(pmat, fi,
                               preferred_element_type=jnp.float32)  # (n_cells, Cout_p)
            spat_ref[i] = pooled_i
            # equal-size bins => mean of the 16 bin means == global (1,1) avg pool
            glob_rows.append(jnp.mean(pooled_i, axis=0, keepdims=True))

        glob = jnp.concatenate(glob_rows, axis=0)                 # (BT, Cout_p) f32

        # --- flatten -> l2norm -> fc -> l2norm (f32, rsqrt on EUP) --------------
        glob = glob * lax.rsqrt(jnp.sum(glob * glob, axis=-1, keepdims=True) + eps)
        y = jnp.dot(glob.astype(jnp.bfloat16), wf_ref[...],
                    preferred_element_type=jnp.float32) + bf_ref[...]
        y = y * lax.rsqrt(jnp.sum(y * y, axis=-1, keepdims=True) + eps)
        for i in range(BT):                                       # use_abs=False, no_imgnorm=False
            feat_ref[i] = y[i:i + 1, :]

    return kernel


# -------------------------------- JAX wrapper ----------------------------------

@partial(jax.jit, static_argnames=("out_hw", "batch_tile"))
def encoder_image_full(images_nchw, params, *, out_hw=(4, 4), batch_tile=8):
    """Forward of EncoderImageFull. Returns (features [B,E], spatial_features [B,C,4,4])."""
    B, Cin, H, W = images_nchw.shape
    conv_w = params["conv_w"]            # (KH, KW, Cin, Cfeat)   stand-in backbone
    conv_b = params["conv_b"]            # (Cfeat,)
    fc_w_t = params["fc_w_t"]            # (Cfeat, E)             fc.weight.T
    fc_b = params["fc_b"]                # (E,)
    KH, KW, _, Cfeat = conv_w.shape
    E = fc_w_t.shape[1]
    oh, ow = out_hw
    n_cells = oh * ow
    HW = H * W
    KC = KH * KW * Cin                   # fused contraction depth (9 * Cin)

    Cout_p = _round_up(max(Cfeat, LANE), LANE)     # lane-dense channel dim
    E_p = _round_up(max(E, LANE), LANE)            # lane-dense embed dim

    BT = min(batch_tile, B)              # images per grid step
    Bp = _round_up(B, BT)
    nb = Bp // BT

    # --- pre-shifted 3x3 patches: (Bp*HW, 9*Cin) bf16 (no HW^2 shift matrices) ---
    ph, pw = (KH - 1) // 2, (KW - 1) // 2
    x_nhwc = jnp.transpose(images_nchw, (0, 2, 3, 1))            # tiny host relayout
    xp = jnp.pad(x_nhwc, ((0, Bp - B), (ph, ph), (pw, pw), (0, 0)))
    taps = [xp[:, dh:dh + H, dw:dw + W, :] for dh in range(KH) for dw in range(KW)]
    patches = jnp.stack(taps, axis=3)                            # (Bp, H, W, taps, Cin)
    patches = patches.reshape(Bp * HW, KC).astype(jnp.bfloat16)

    # --- batch-independent constants (fetched into VMEM once, reused per step) ---
    P = jnp.asarray(_build_pool_matrix(H, W, oh, ow), jnp.bfloat16)   # (16, HW)
    wc = jnp.pad(conv_w, ((0, 0), (0, 0), (0, 0), (0, Cout_p - Cfeat)))
    wc = wc.reshape(KC, Cout_p).astype(jnp.bfloat16)                  # fused conv weight
    bc = jnp.pad(conv_b, (0, Cout_p - Cfeat)).reshape(1, Cout_p).astype(jnp.float32)
    wf = jnp.pad(fc_w_t, ((0, Cout_p - Cfeat), (0, E_p - E))).astype(jnp.bfloat16)
    bf = jnp.pad(fc_b, (0, E_p - E)).reshape(1, E_p).astype(jnp.float32)

    kernel = _make_fused_kernel(BT, HW, KC, Cout_p, E_p, n_cells)

    # honest cost estimate (conv is a single K=KC contraction now)
    flops = Bp * (2 * HW * KC * Cout_p + 2 * n_cells * HW * Cout_p + 2 * Cout_p * E_p)
    bytes_accessed = (patches.size * 2 + wc.size * 2 + P.size * 2 + wf.size * 2
                      + bc.size * 4 + bf.size * 4
                      + Bp * n_cells * Cout_p * 4 + Bp * E_p * 4)

    spat, feats = pl.pallas_call(
        kernel,
        out_shape=(
            jax.ShapeDtypeStruct((Bp, n_cells, Cout_p), jnp.float32),
            jax.ShapeDtypeStruct((Bp, 1, E_p), jnp.float32),
        ),
        grid=(nb,),
        in_specs=[
            pl.BlockSpec((BT * HW, KC), lambda i: (i, 0)),       # per-tile patches
            pl.BlockSpec((KC, Cout_p), lambda i: (0, 0)),        # fused conv weight
            pl.BlockSpec((1, Cout_p), lambda i: (0, 0)),         # conv bias
            pl.BlockSpec((n_cells, HW), lambda i: (0, 0)),       # pool matrix
            pl.BlockSpec((Cout_p, E_p), lambda i: (0, 0)),       # fc weight
            pl.BlockSpec((1, E_p), lambda i: (0, 0)),            # fc bias
        ],
        out_specs=(
            pl.BlockSpec((BT, n_cells, Cout_p), lambda i: (i, 0, 0)),
            pl.BlockSpec((BT, 1, E_p), lambda i: (i, 0, 0)),
        ),
        compiler_params=pltpu.CompilerParams(
            dimension_semantics=("parallel",),   # shard batch tiles across v7x's 2 TCs
            vmem_limit_bytes=_vmem_limit_bytes(),
        ),
        cost_estimate=pl.CostEstimate(
            flops=flops, transcendentals=2 * Bp, bytes_accessed=bytes_accessed),
    )(patches, wc, bc, P, wf, bf)

    features = feats[:B, 0, :E]                                          # (B, E)
    spatial_features = (spat[:B, :, :Cfeat]
                        .reshape(B, oh, ow, Cfeat)
                        .transpose(0, 3, 1, 2))                          # (B, C, 4, 4)
    return features, spatial_features


# ---------------------------------- driver ------------------------------------

if __name__ == "__main__":
    key = jax.random.PRNGKey(0)
    B, Cin, Himg, Wimg = 2, 4, 16, 16      # images
    Cfeat = 32                             # stand-in spatial_feats_dim
    E = 32                                 # embed_size

    k_img, k_conv, k_fc = jax.random.split(key, 3)
    images = jax.random.normal(k_img, (B, Cin, Himg, Wimg), jnp.float32)

    # Stand-in backbone params (deterministic).
    conv_w = jax.random.normal(k_conv, (3, 3, Cin, Cfeat), jnp.float32) * 0.1
    conv_b = jnp.zeros((Cfeat,), jnp.float32)

    # fc: Xavier-uniform init exactly like EncoderImageFull.init_weights().
    r = float(np.sqrt(6.0) / np.sqrt(Cfeat + E))
    fc_w = jax.random.uniform(k_fc, (E, Cfeat), jnp.float32, minval=-r, maxval=r)
    fc_b = jnp.zeros((E,), jnp.float32)

    params = {
        "conv_w": conv_w,
        "conv_b": conv_b,
        "fc_w_t": fc_w.T,   # kernel consumes [in, out]; matches x @ W.T + b
        "fc_b": fc_b,
    }

    features, spatial_features = encoder_image_full(images, params)
    jax.block_until_ready((features, spatial_features))

    assert features.shape == (B, E)
    assert spatial_features.shape == (B, Cfeat, 4, 4)
    assert bool(jnp.all(jnp.isfinite(features)))
    assert bool(jnp.all(jnp.isfinite(spatial_features)))
    print("KERNEL_OK")
</pallas_src>

<mosaic_0001>
module attributes {stable_mosaic.version = 11 : i64} {
  func.func @kernel(%arg0: i32, %arg1: memref<512x36xbf16, #tpu.memory_space<vmem>>, %arg2: memref<36x128xbf16, #tpu.memory_space<vmem>>, %arg3: memref<1x128xf32, #tpu.memory_space<vmem>>, %arg4: memref<16x256xbf16, #tpu.memory_space<vmem>>, %arg5: memref<128x128xbf16, #tpu.memory_space<vmem>>, %arg6: memref<1x128xf32, #tpu.memory_space<vmem>>, %arg7: memref<2x16x128xf32, #tpu.memory_space<vmem>>, %arg8: memref<2x1x128xf32, #tpu.memory_space<vmem>>) attributes {dimension_semantics = [#tpu.dimension_semantics<parallel>], iteration_bounds = array<i64: 1>, scalar_prefetch = 0 : i64, scratch_operands = 0 : i64, tpu.core_type = #tpu.core_type<tc>, window_params = [{transform_indices = @transform_0, window_bounds = array<i64: 512, 36>}, {pipeline_mode = #tpu.pipeline_mode<synchronous>, transform_indices = @transform_1, window_bounds = array<i64: 36, 128>}, {pipeline_mode = #tpu.pipeline_mode<synchronous>, transform_indices = @transform_2, window_bounds = array<i64: 1, 128>}, {pipeline_mode = #tpu.pipeline_mode<synchronous>, transform_indices = @transform_3, window_bounds = array<i64: 16, 256>}, {pipeline_mode = #tpu.pipeline_mode<synchronous>, transform_indices = @transform_4, window_bounds = array<i64: 128, 128>}, {pipeline_mode = #tpu.pipeline_mode<synchronous>, transform_indices = @transform_5, window_bounds = array<i64: 1, 128>}, {transform_indices = @transform_6, window_bounds = array<i64: 2, 16, 128>}, {transform_indices = @transform_7, window_bounds = array<i64: 2, 1, 128>}]} {
    %c0 = arith.constant 0 : index
    %c0_0 = arith.constant 0 : index
    %0 = vector.load %arg1[%c0, %c0_0] : memref<512x36xbf16, #tpu.memory_space<vmem>>, vector<512x36xbf16>
    %c0_1 = arith.constant 0 : index
    %c0_2 = arith.constant 0 : index
    %1 = vector.load %arg2[%c0_1, %c0_2] : memref<36x128xbf16, #tpu.memory_space<vmem>>, vector<36x128xbf16>
    %cst = arith.constant dense<0.000000e+00> : vector<512x128xf32>
    %2 = tpu.matmul %0, %1, %cst {dimension_numbers = #tpu.dot_dimension_numbers<[1], [0], [0], [1], [0, 0, 1, 1], [], []>} : vector<512x36xbf16>, vector<36x128xbf16>, vector<512x128xf32> -> vector<512x128xf32>
    %c0_3 = arith.constant 0 : index
    %c0_4 = arith.constant 0 : index
    %3 = vector.load %arg3[%c0_3, %c0_4] : memref<1x128xf32, #tpu.memory_space<vmem>>, vector<1x128xf32>
    %4 = vector.broadcast %3 : vector<1x128xf32> to vector<512x128xf32>
    %5 = arith.addf %2, %4 : vector<512x128xf32>
    %cst_5 = arith.constant 0.000000e+00 : f32
    %6 = vector.broadcast %cst_5 : f32 to vector<512x128xf32>
    %7 = arith.maximumf %5, %6 : vector<512x128xf32>
    %8 = arith.truncf %7 : vector<512x128xf32> to vector<512x128xbf16>
    %c0_6 = arith.constant 0 : index
    %c0_7 = arith.constant 0 : index
    %9 = vector.load %arg4[%c0_6, %c0_7] : memref<16x256xbf16, #tpu.memory_space<vmem>>, vector<16x256xbf16>
    %10 = vector.extract_strided_slice %8 {offsets = [0, 0], sizes = [256, 128], strides = [1, 1]} : vector<512x128xbf16> to vector<256x128xbf16>
    %cst_8 = arith.constant dense<0.000000e+00> : vector<16x128xf32>
    %11 = tpu.matmul %9, %10, %cst_8 {dimension_numbers = #tpu.dot_dimension_numbers<[1], [0], [0], [1], [0, 0, 1, 1], [], []>} : vector<16x256xbf16>, vector<256x128xbf16>, vector<16x128xf32> -> vector<16x128xf32>
    %c0_9 = arith.constant 0 : index
    %c0_10 = arith.constant 0 : index
    %c0_11 = arith.constant 0 : index
    %12 = vector.load %arg7[%c0_9, %c0_10, %c0_11] : memref<2x16x128xf32, #tpu.memory_space<vmem>>, vector<1x16x128xf32>
    %13 = vector.shape_cast %12 : vector<1x16x128xf32> to vector<16x128xf32>
    %14 = vector.shape_cast %11 : vector<16x128xf32> to vector<1x16x128xf32>
    tpu.vector_store %arg7[%c0_9, %c0_10, %c0_11], %14 {strides = array<i32>} : memref<2x16x128xf32, #tpu.memory_space<vmem>>, vector<1x16x128xf32>,
    %cst_12 = arith.constant dense<0.000000e+00> : vector<128xf32>
    %15 = vector.multi_reduction <add>, %11, %cst_12 [0] : vector<16x128xf32> to vector<128xf32>
    %16 = vector.shape_cast %15 : vector<128xf32> to vector<1x128xf32>
    %cst_13 = arith.constant 1.600000e+01 : f32
    %17 = vector.broadcast %cst_13 : f32 to vector<1x128xf32>
    %18 = arith.divf %16, %17 : vector<1x128xf32>
    %19 = vector.extract_strided_slice %8 {offsets = [256, 0], sizes = [256, 128], strides = [1, 1]} : vector<512x128xbf16> to vector<256x128xbf16>
    %cst_14 = arith.constant dense<0.000000e+00> : vector<16x128xf32>
    %20 = tpu.matmul %9, %19, %cst_14 {dimension_numbers = #tpu.dot_dimension_numbers<[1], [0], [0], [1], [0, 0, 1, 1], [], []>} : vector<16x256xbf16>, vector<256x128xbf16>, vector<16x128xf32> -> vector<16x128xf32>
    %c1 = arith.constant 1 : index
    %c0_15 = arith.constant 0 : index
    %c0_16 = arith.constant 0 : index
    %21 = vector.load %arg7[%c1, %c0_15, %c0_16] : memref<2x16x128xf32, #tpu.memory_space<vmem>>, vector<1x16x128xf32>
    %22 = vector.shape_cast %21 : vector<1x16x128xf32> to vector<16x128xf32>
    %23 = vector.shape_cast %20 : vector<16x128xf32> to vector<1x16x128xf32>
    tpu.vector_store %arg7[%c1, %c0_15, %c0_16], %23 {strides = array<i32>} : memref<2x16x128xf32, #tpu.memory_space<vmem>>, vector<1x16x128xf32>,
    %cst_17 = arith.constant dense<0.000000e+00> : vector<128xf32>
    %24 = vector.multi_reduction <add>, %20, %cst_17 [0] : vector<16x128xf32> to vector<128xf32>
    %25 = vector.shape_cast %24 : vector<128xf32> to vector<1x128xf32>
    %cst_18 = arith.constant 1.600000e+01 : f32
    %26 = vector.broadcast %cst_18 : f32 to vector<1x128xf32>
    %27 = arith.divf %25, %26 : vector<1x128xf32>
    %28 = tpu.concatenate %18, %27 in 0 : vector<1x128xf32>, vector<1x128xf32> -> vector<2x128xf32>
    %29 = arith.mulf %28, %28 : vector<2x128xf32>
    %cst_19 = arith.constant dense<0.000000e+00> : vector<2xf32>
    %30 = vector.multi_reduction <add>, %29, %cst_19 [1] : vector<2x128xf32> to vector<2xf32>
    %31 = vector.shape_cast %30 : vector<2xf32> to vector<2x1xf32>
    %cst_20 = arith.constant 9.99999993E-9 : f32
    %32 = vector.broadcast %cst_20 : f32 to vector<2x1xf32>
    %33 = arith.addf %31, %32 : vector<2x1xf32>
    %34 = math.rsqrt %33 : vector<2x1xf32>
    %35 = vector.broadcast %34 : vector<2x1xf32> to vector<2x128xf32>
    %36 = arith.mulf %28, %35 : vector<2x128xf32>
    %37 = arith.truncf %36 : vector<2x128xf32> to vector<2x128xbf16>
    %c0_21 = arith.constant 0 : index
    %c0_22 = arith.constant 0 : index
    %38 = vector.load %arg5[%c0_21, %c0_22] : memref<128x128xbf16, #tpu.memory_space<vmem>>, vector<128x128xbf16>
    %cst_23 = arith.constant dense<0.000000e+00> : vector<2x128xf32>
    %39 = tpu.matmul %37, %38, %cst_23 {dimension_numbers = #tpu.dot_dimension_numbers<[1], [0], [0], [1], [0, 0, 1, 1], [], []>} : vector<2x128xbf16>, vector<128x128xbf16>, vector<2x128xf32> -> vector<2x128xf32>
    %c0_24 = arith.constant 0 : index
    %c0_25 = arith.constant 0 : index
    %40 = vector.load %arg6[%c0_24, %c0_25] : memref<1x128xf32, #tpu.memory_space<vmem>>, vector<1x128xf32>
    %41 = vector.broadcast %40 : vector<1x128xf32> to vector<2x128xf32>
    %42 = arith.addf %39, %41 : vector<2x128xf32>
    %43 = arith.mulf %42, %42 : vector<2x128xf32>
    %cst_26 = arith.constant dense<0.000000e+00> : vector<2xf32>
    %44 = vector.multi_reduction <add>, %43, %cst_26 [1] : vector<2x128xf32> to vector<2xf32>
    %45 = vector.shape_cast %44 : vector<2xf32> to vector<2x1xf32>
    %cst_27 = arith.constant 9.99999993E-9 : f32
    %46 = vector.broadcast %cst_27 : f32 to vector<2x1xf32>
    %47 = arith.addf %45, %46 : vector<2x1xf32>
    %48 = math.rsqrt %47 : vector<2x1xf32>
    %49 = vector.broadcast %48 : vector<2x1xf32> to vector<2x128xf32>
    %50 = arith.mulf %42, %49 : vector<2x128xf32>
    %51 = vector.extract_strided_slice %50 {offsets = [0, 0], sizes = [1, 128], strides = [1, 1]} : vector<2x128xf32> to vector<1x128xf32>
    %c0_28 = arith.constant 0 : index
    %c0_29 = arith.constant 0 : index
    %c0_30 = arith.constant 0 : index
    %52 = vector.load %arg8[%c0_28, %c0_29, %c0_30] : memref<2x1x128xf32, #tpu.memory_space<vmem>>, vector<1x1x128xf32>
    %53 = vector.shape_cast %52 : vector<1x1x128xf32> to vector<1x128xf32>
    %54 = vector.shape_cast %51 : vector<1x128xf32> to vector<1x1x128xf32>
    tpu.vector_store %arg8[%c0_28, %c0_29, %c0_30], %54 {strides = array<i32>} : memref<2x1x128xf32, #tpu.memory_space<vmem>>, vector<1x1x128xf32>,
    %55 = vector.extract_strided_slice %50 {offsets = [1, 0], sizes = [1, 128], strides = [1, 1]} : vector<2x128xf32> to vector<1x128xf32>
    %c1_31 = arith.constant 1 : index
    %c0_32 = arith.constant 0 : index
    %c0_33 = arith.constant 0 : index
    %56 = vector.load %arg8[%c1_31, %c0_32, %c0_33] : memref<2x1x128xf32, #tpu.memory_space<vmem>>, vector<1x1x128xf32>
    %57 = vector.shape_cast %56 : vector<1x1x128xf32> to vector<1x128xf32>
    %58 = vector.shape_cast %55 : vector<1x128xf32> to vector<1x1x128xf32>
    tpu.vector_store %arg8[%c1_31, %c0_32, %c0_33], %58 {strides = array<i32>} : memref<2x1x128xf32, #tpu.memory_space<vmem>>, vector<1x1x128xf32>,
    return
  }
  func.func @transform_0(%arg0: i32) -> (i32, i32) {
    %c0_i32 = arith.constant 0 : i32
    %c0_i32_0 = arith.constant 0 : i32
    return %arg0, %c0_i32 : i32, i32
  }
  func.func @transform_1(%arg0: i32) -> (i32, i32) {
    %c0_i32 = arith.constant 0 : i32
    %c0_i32_0 = arith.constant 0 : i32
    %c0_i32_1 = arith.constant 0 : i32
    return %c0_i32, %c0_i32_0 : i32, i32
  }
  func.func @transform_2(%arg0: i32) -> (i32, i32) {
    %c0_i32 = arith.constant 0 : i32
    %c0_i32_0 = arith.constant 0 : i32
    %c0_i32_1 = arith.constant 0 : i32
    return %c0_i32, %c0_i32_0 : i32, i32
  }
  func.func @transform_3(%arg0: i32) -> (i32, i32) {
    %c0_i32 = arith.constant 0 : i32
    %c0_i32_0 = arith.constant 0 : i32
    %c0_i32_1 = arith.constant 0 : i32
    return %c0_i32, %c0_i32_0 : i32, i32
  }
  func.func @transform_4(%arg0: i32) -> (i32, i32) {
    %c0_i32 = arith.constant 0 : i32
    %c0_i32_0 = arith.constant 0 : i32
    %c0_i32_1 = arith.constant 0 : i32
    return %c0_i32, %c0_i32_0 : i32, i32
  }
  func.func @transform_5(%arg0: i32) -> (i32, i32) {
    %c0_i32 = arith.constant 0 : i32
    %c0_i32_0 = arith.constant 0 : i32
    %c0_i32_1 = arith.constant 0 : i32
    return %c0_i32, %c0_i32_0 : i32, i32
  }
  func.func @transform_6(%arg0: i32) -> (i32, i32, i32) {
    %c0_i32 = arith.constant 0 : i32
    %c0_i32_0 = arith.constant 0 : i32
    %c0_i32_1 = arith.constant 0 : i32
    return %arg0, %c0_i32, %c0_i32_0 : i32, i32, i32
  }
  func.func @transform_7(%arg0: i32) -> (i32, i32, i32) {
    %c0_i32 = arith.constant 0 : i32
    %c0_i32_0 = arith.constant 0 : i32
    %c0_i32_1 = arith.constant 0 : i32
    return %arg0, %c0_i32, %c0_i32_0 : i32, i32, i32
  }
}

</mosaic_0001>

<llo_original>
// kernel: encoder_image_full.1
$region0: #{encoder_image_full.1}
  #allocation0 [shape = 'u32[]', space=smem, size = 0x4, offset = 0x4, fixed_abs, tag = 'smem constant byte address 0x4 - core index']
  #allocation1 [shape = 'u32[144,128]{1,0:T(1,128)}', space=vmem, size = 0x12000, scoped, tag = 'internal scratch']
  %s0 = inlined_call_operand.vmem [shape: bf16[512,36], index: 0, kind: input, shape index: {}]
  %s1 = inlined_call_operand.vmem [shape: bf16[36,128], index: 1, kind: input, shape index: {}]
  %s2 = inlined_call_operand.vmem [shape: f32[1,128], index: 2, kind: input, shape index: {}]
  %s3 = inlined_call_operand.vmem [shape: bf16[16,256], index: 3, kind: input, shape index: {}]
  %s4 = inlined_call_operand.vmem [shape: bf16[128,128], index: 4, kind: input, shape index: {}]
  %s5 = inlined_call_operand.vmem [shape: f32[1,128], index: 5, kind: input, shape index: {}]
  %s6 = inlined_call_operand.hbm [shape: f32[2,16,128], index: 6, kind: output, shape index: {0}]
  %s7 = inlined_call_operand.hbm [shape: f32[2,1,128], index: 7, kind: output, shape index: {1}]
  %8 = xla_tuple %s6, %s7
  %s9 = sld [smem:[#allocation0]]
  $region42: #{encoder_image_full.1} parent=0
    _
  %s11 = ssub.s32 1, %s9
  %s12 = scalar_select 0, %s11, %s9
  $region1: #{encoder_image_full.1} parent=0
    #allocation2 [shape = 'u8[16384]{0}', space=vmem, size = 0x4000, scoped, tag = 'output window, operand 0, single buffered']
    #allocation3 [shape = 's32[1]{0}', space=sflag, size = 0x4, scoped, tag = 'scoped memory for encoder_image_full.1']
    #allocation4 [shape = 'u8[1024]{0}', space=vmem, size = 0x400, scoped, tag = 'output window, operand 1, single buffered']
    #allocation5 [shape = 's32[1]{0}', space=sflag, size = 0x4, scoped, tag = 'scoped memory for encoder_image_full.1']
    %13 = vsyncpa [#allocation3], 0
    %14 = vsyncpa [#allocation5], 0
    // Predicated region
    $region2: #{encoder_image_full.1} parent=1 // pred_check
      _
    $region3: #{encoder_image_full.1} parent=1 // pred_check_branch
      %16 = sbr.rel (0) target = $region5
    $region4: #{encoder_image_full.1} parent=1 // pred_region
      _
    $region5: #{encoder_image_full.1} parent=1 // pred_fallthru
      _
    // Predicated region
    $region6: #{encoder_image_full.1} parent=1 // pred_check
      _
    $region7: #{encoder_image_full.1} parent=1 // pred_check_branch
      %18 = sbr.rel (0) target = $region9
    $region8: #{encoder_image_full.1} parent=1 // pred_region
      _
    $region9: #{encoder_image_full.1} parent=1 // pred_fallthru
      _
    // Predicated region
    $region10: #{encoder_image_full.1} parent=1 // pred_check
      _
    $region11: #{encoder_image_full.1} parent=1 // pred_check_branch
      %20 = sbr.rel (0) target = $region13
    $region12: #{encoder_image_full.1} parent=1 // pred_region
      _
    $region13: #{encoder_image_full.1} parent=1 // pred_fallthru
      _
    // Predicated region
    $region14: #{encoder_image_full.1} parent=1 // pred_check
      _
    $region15: #{encoder_image_full.1} parent=1 // pred_check_branch
      %22 = sbr.rel (0) target = $region17
    $region16: #{encoder_image_full.1} parent=1 // pred_region
      _
    $region17: #{encoder_image_full.1} parent=1 // pred_fallthru
      _
    // Predicated region
    $region18: #{encoder_image_full.1} parent=1 // pred_check
      _
    $region19: #{encoder_image_full.1} parent=1 // pred_check_branch
      %24 = sbr.rel (0) target = $region21
    $region20: #{encoder_image_full.1} parent=1 // pred_region
      _
    $region21: #{encoder_image_full.1} parent=1 // pred_fallthru
      _
    // Predicated region
    $region22: #{encoder_image_full.1} parent=1 // pred_check
      _
    $region23: #{encoder_image_full.1} parent=1 // pred_check_branch
      %26 = sbr.rel (0) target = $region25
    $region24: #{encoder_image_full.1} parent=1 // pred_region
      _
    $region25: #{encoder_image_full.1} parent=1 // pred_fallthru
      _
    %v28 = vld [vmem:[%s0] sm:$0xf]
    %v29 = vld [vmem:[%s0 + $0x4] sm:$0xf]
    %v30 = vld [vmem:[%s0 + $0x8] sm:$0xf]
    %v31 = vld [vmem:[%s0 + $0xc] sm:$0xf]
    %v32 = vld [vmem:[%s0 + $0x10] sm:$0xf]
    %v33 = vld [vmem:[%s0 + $0x14] sm:$0xf]
    %v34 = vld [vmem:[%s0 + $0x18] sm:$0xf]
    %v35 = vld [vmem:[%s0 + $0x1c] sm:$0xf]
    %v36 = vld [vmem:[%s0 + $0x20] sm:$0xf]
    %v37 = vld [vmem:[%s0 + $0x24] sm:$0xf]
    %v38 = vld [vmem:[%s0 + $0x28] sm:$0xf]
    %v39 = vld [vmem:[%s0 + $0x2c] sm:$0xf]
    %v40 = vld [vmem:[%s0 + $0x30] sm:$0xf]
    %v41 = vld [vmem:[%s0 + $0x34] sm:$0xf]
    %v42 = vld [vmem:[%s0 + $0x38] sm:$0xf]
    %v43 = vld [vmem:[%s0 + $0x3c] sm:$0xf]
    %v44 = vld [vmem:[%s0 + $0x40] sm:$0xf]
    %v45 = vld [vmem:[%s0 + $0x44] sm:$0xf]
    %v46 = vld [vmem:[%s0 + $0x48] sm:$0xf]
    %v47 = vld [vmem:[%s0 + $0x4c] sm:$0xf]
    %v48 = vld [vmem:[%s0 + $0x50] sm:$0xf]
    %v49 = vld [vmem:[%s0 + $0x54] sm:$0xf]
    %v50 = vld [vmem:[%s0 + $0x58] sm:$0xf]
    %v51 = vld [vmem:[%s0 + $0x5c] sm:$0xf]
    %v52 = vld [vmem:[%s0 + $0x60] sm:$0xf]
    %v53 = vld [vmem:[%s0 + $0x64] sm:$0xf]
    %v54 = vld [vmem:[%s0 + $0x68] sm:$0xf]
    %v55 = vld [vmem:[%s0 + $0x6c] sm:$0xf]
    %v56 = vld [vmem:[%s0 + $0x70] sm:$0xf]
    %v57 = vld [vmem:[%s0 + $0x74] sm:$0xf]
    %v58 = vld [vmem:[%s0 + $0x78] sm:$0xf]
    %v59 = vld [vmem:[%s0 + $0x7c] sm:$0xf]
    %v60 = vld [vmem:[%s0 + $0x80] sm:$0xf]
    %v61 = vld [vmem:[%s0 + $0x84] sm:$0xf]
    %v62 = vld [vmem:[%s0 + $0x88] sm:$0xf]
    %v63 = vld [vmem:[%s0 + $0x8c] sm:$0xf]
    %v64 = vld [vmem:[%s0 + $0x90] sm:$0xf]
    %v65 = vld [vmem:[%s0 + $0x94] sm:$0xf]
    %v66 = vld [vmem:[%s0 + $0x98] sm:$0xf]
    %v67 = vld [vmem:[%s0 + $0x9c] sm:$0xf]
    %v68 = vld [vmem:[%s0 + $0xa0] sm:$0xf]
    %v69 = vld [vmem:[%s0 + $0xa4] sm:$0xf]
    %v70 = vld [vmem:[%s0 + $0xa8] sm:$0xf]
    %v71 = vld [vmem:[%s0 + $0xac] sm:$0xf]
    %v72 = vld [vmem:[%s0 + $0xb0] sm:$0xf]
    %v73 = vld [vmem:[%s0 + $0xb4] sm:$0xf]
    %v74 = vld [vmem:[%s0 + $0xb8] sm:$0xf]
    %v75 = vld [vmem:[%s0 + $0xbc] sm:$0xf]
    %v76 = vld [vmem:[%s0 + $0xc0] sm:$0xf]
    %v77 = vld [vmem:[%s0 + $0xc4] sm:$0xf]
    %v78 = vld [vmem:[%s0 + $0xc8] sm:$0xf]
    %v79 = vld [vmem:[%s0 + $0xcc] sm:$0xf]
    %v80 = vld [vmem:[%s0 + $0xd0] sm:$0xf]
    %v81 = vld [vmem:[%s0 + $0xd4] sm:$0xf]
    %v82 = vld [vmem:[%s0 + $0xd8] sm:$0xf]
    %v83 = vld [vmem:[%s0 + $0xdc] sm:$0xf]
    %v84 = vld [vmem:[%s0 + $0xe0] sm:$0xf]
    %v85 = vld [vmem:[%s0 + $0xe4] sm:$0xf]
    %v86 = vld [vmem:[%s0 + $0xe8] sm:$0xf]
    %v87 = vld [vmem:[%s0 + $0xec] sm:$0xf]
    %v88 = vld [vmem:[%s0 + $0xf0] sm:$0xf]
    %v89 = vld [vmem:[%s0 + $0xf4] sm:$0xf]
    %v90 = vld [vmem:[%s0 + $0xf8] sm:$0xf]
    %v91 = vld [vmem:[%s0 + $0xfc] sm:$0xf]
    %v92 = vld [vmem:[%s1] sm:$0xf]
    %v93 = vld [vmem:[%s1 + $0x4] sm:$0xf]
    %v94 = vld [vmem:[%s1 + $0x8] sm:$0xf]
    %v95 = vld [vmem:[%s1 + $0xc] sm:$0xf]
    %v96 = vld [vmem:[%s1 + $0x10] sm:$0x3]
    %v97 = vld [vmem:[%s2] sm:$0x1]
    %v99 = vlaneseq
    %v100 = vshrl.u32 %v99, 7
    %v101 = vsub.s32 0, %v100
    %v102 = vrot.slane %v97, %v101
    %v168 = vunpack.c.l.b16 %v28
    %v169 = vunpack.c.l.b16 %v29
    %v170 = vunpack.c.l.b16 %v30
    %v171 = vunpack.c.l.b16 %v31
    %v172 = vunpack.c.l.b16 %v32
    %v173 = vunpack.c.l.b16 %v33
    %v174 = vunpack.c.l.b16 %v34
    %v175 = vunpack.c.l.b16 %v35
    %v176 = vunpack.c.l.b16 %v36
    %v177 = vunpack.c.l.b16 %v37
    %v178 = vunpack.c.l.b16 %v38
    %v179 = vunpack.c.l.b16 %v39
    %v180 = vunpack.c.l.b16 %v40
    %v181 = vunpack.c.l.b16 %v41
    %v182 = vunpack.c.l.b16 %v42
    %v183 = vunpack.c.l.b16 %v43
    %v184 = vunpack.c.l.b16 %v44
    %v185 = vunpack.c.l.b16 %v45
    %v186 = vunpack.c.l.b16 %v46
    %v187 = vunpack.c.l.b16 %v47
    %v188 = vunpack.c.l.b16 %v48
    %v189 = vunpack.c.l.b16 %v49
    %v190 = vunpack.c.l.b16 %v50
    %v191 = vunpack.c.l.b16 %v51
    %v192 = vunpack.c.l.b16 %v52
    %v193 = vunpack.c.l.b16 %v53
    %v194 = vunpack.c.l.b16 %v54
    %v195 = vunpack.c.l.b16 %v55
    %v196 = vunpack.c.l.b16 %v56
    %v197 = vunpack.c.l.b16 %v57
    %v198 = vunpack.c.l.b16 %v58
    %v199 = vunpack.c.l.b16 %v59
    %v200 = vunpack.c.l.b16 %v60
    %v201 = vunpack.c.l.b16 %v61
    %v202 = vunpack.c.l.b16 %v62
    %v203 = vunpack.c.l.b16 %v63
    %v204 = vunpack.c.l.b16 %v64
    %v205 = vunpack.c.l.b16 %v65
    %v206 = vunpack.c.l.b16 %v66
    %v207 = vunpack.c.l.b16 %v67
    %v208 = vunpack.c.l.b16 %v68
    %v209 = vunpack.c.l.b16 %v69
    %v210 = vunpack.c.l.b16 %v70
    %v211 = vunpack.c.l.b16 %v71
    %v212 = vunpack.c.l.b16 %v72
    %v213 = vunpack.c.l.b16 %v73
    %v214 = vunpack.c.l.b16 %v74
    %v215 = vunpack.c.l.b16 %v75
    %v216 = vunpack.c.l.b16 %v76
    %v217 = vunpack.c.l.b16 %v77
    %v218 = vunpack.c.l.b16 %v78
    %v219 = vunpack.c.l.b16 %v79
    %v220 = vunpack.c.l.b16 %v80
    %v221 = vunpack.c.l.b16 %v81
    %v222 = vunpack.c.l.b16 %v82
    %v223 = vunpack.c.l.b16 %v83
    %v224 = vunpack.c.l.b16 %v84
    %v225 = vunpack.c.l.b16 %v85
    %v226 = vunpack.c.l.b16 %v86
    %v227 = vunpack.c.l.b16 %v87
    %v228 = vunpack.c.l.b16 %v88
    %v229 = vunpack.c.l.b16 %v89
    %v230 = vunpack.c.l.b16 %v90
    %v231 = vunpack.c.l.b16 %v91
    %v232 = vpack.c.b16 %v169, %v168
    %v233 = vpack.c.b16 %v171, %v170
    %v234 = vpack.c.b16 %v173, %v172
    %v235 = vpack.c.b16 %v175, %v174
    %v236 = vpack.c.b16 %v177, %v176
    %v237 = vpack.c.b16 %v179, %v178
    %v238 = vpack.c.b16 %v181, %v180
    %v239 = vpack.c.b16 %v183, %v182
    %v240 = vpack.c.b16 %v185, %v184
    %v241 = vpack.c.b16 %v187, %v186
    %v242 = vpack.c.b16 %v189, %v188
    %v243 = vpack.c.b16 %v191, %v190
    %v244 = vpack.c.b16 %v193, %v192
    %v245 = vpack.c.b16 %v195, %v194
    %v246 = vpack.c.b16 %v197, %v196
    %v247 = vpack.c.b16 %v199, %v198
    %v248 = vpack.c.b16 %v201, %v200
    %v249 = vpack.c.b16 %v203, %v202
    %v250 = vpack.c.b16 %v205, %v204
    %v251 = vpack.c.b16 %v207, %v206
    %v252 = vpack.c.b16 %v209, %v208
    %v253 = vpack.c.b16 %v211, %v210
    %v254 = vpack.c.b16 %v213, %v212
    %v255 = vpack.c.b16 %v215, %v214
    %v256 = vpack.c.b16 %v217, %v216
    %v257 = vpack.c.b16 %v219, %v218
    %v258 = vpack.c.b16 %v221, %v220
    %v259 = vpack.c.b16 %v223, %v222
    %v260 = vpack.c.b16 %v225, %v224
    %v261 = vpack.c.b16 %v227, %v226
    %v262 = vpack.c.b16 %v229, %v228
    %v263 = vpack.c.b16 %v231, %v230
    %v269 = vunpack.c.l.b16 %v92
    %v270 = vunpack.c.l.b16 %v93
    %v271 = vunpack.c.l.b16 %v94
    %v272 = vunpack.c.l.b16 %v95
    %v273 = vunpack.c.l.b16 %v96
    %v274 = vpack.c.b16 %v270, %v269
    %v275 = vpack.c.b16 %v272, %v271
    %v276 = vpack.c.b16 %v273, %v273
    %vm279 = vcmask 293888
    %v281 = vsel %vm279, %v232, 0
    %v284 = vsel %vm279, %v233, 0
    %v287 = vsel %vm279, %v234, 0
    %v290 = vsel %vm279, %v235, 0
    %v293 = vsel %vm279, %v236, 0
    %v296 = vsel %vm279, %v237, 0
    %v299 = vsel %vm279, %v238, 0
    %v302 = vsel %vm279, %v239, 0
    %v305 = vsel %vm279, %v240, 0
    %v308 = vsel %vm279, %v241, 0
    %v311 = vsel %vm279, %v242, 0
    %v314 = vsel %vm279, %v243, 0
    %v317 = vsel %vm279, %v244, 0
    %v320 = vsel %vm279, %v245, 0
    %v323 = vsel %vm279, %v246, 0
    %v326 = vsel %vm279, %v247, 0
    %v329 = vsel %vm279, %v248, 0
    %v332 = vsel %vm279, %v249, 0
    %v335 = vsel %vm279, %v250, 0
    %v338 = vsel %vm279, %v251, 0
    %v341 = vsel %vm279, %v252, 0
    %v344 = vsel %vm279, %v253, 0
    %v347 = vsel %vm279, %v254, 0
    %v350 = vsel %vm279, %v255, 0
    %v353 = vsel %vm279, %v256, 0
    %v356 = vsel %vm279, %v257, 0
    %v359 = vsel %vm279, %v258, 0
    %v362 = vsel %vm279, %v259, 0
    %v365 = vsel %vm279, %v260, 0
    %v368 = vsel %vm279, %v261, 0
    %v371 = vsel %vm279, %v262, 0
    %v374 = vsel %vm279, %v263, 0
    %vm376 = vcmask 1041408
    %v378 = vsel %vm376, %v276, 0
    %380 = vmatprep.subr.bf16.mxu0 0
    %381 = vmatpush1.bf16.msra.mxu0 %v274
    %382 = vmatprep.subr.bf16.mxu0 0
    %383 = vmatpush1.bf16.msra.mxu0 %v275
    %384 = vmatprep.subr.bf16.mxu0 0
    %385 = vmatpush1.bf16.msra.mxu0 %v378
    %386 = vmatprep.subr.bf16.mxu0 0
    %387 = vmatpush1.bf16.msra.mxu0 0
    %388 = vmatprep.subr.bf16.mxu0 0
    %389 = vmatpush1.bf16.msra.mxu0 0
    %390 = vmatprep.subr.bf16.mxu0 0
    %391 = vmatpush1.bf16.msra.mxu0 0
    %392 = vmatprep.subr.bf16.mxu0 0
    %393 = vmatpush1.bf16.msra.mxu0 0
    %394 = vmatprep.subr.bf16.mxu0 0
    %395 = vmatpush1.bf16.msra.mxu0 0
    %396 = vmatprep.subr.bf16.mxu0 0
    %397 = vmatpush1.bf16.msra.mxu0 0
    %398 = vmatprep.subr.bf16.mxu0 0
    %399 = vmatpush1.bf16.msra.mxu0 0
    %400 = vmatprep.subr.bf16.mxu0 0
    %401 = vmatpush1.bf16.msra.mxu0 0
    %402 = vmatprep.subr.bf16.mxu0 0
    %403 = vmatpush1.bf16.msra.mxu0 0
    %404 = vmatprep.subr.bf16.mxu0 0
    %405 = vmatpush1.bf16.msra.mxu0 0
    %406 = vmatprep.subr.bf16.mxu0 0
    %407 = vmatpush1.bf16.msra.mxu0 0
    %408 = vmatprep.subr.bf16.mxu0 0
    %409 = vmatpush1.bf16.msra.mxu0 0
    %410 = vmatprep.subr.bf16.mxu0 0
    %411 = vmatpush1.bf16.msra.mxu0 0
    %412 = vmatprep.mubr.bf16.mxu0 0
    %413 = vmatmul.mubr.bf16.gmra.mrb[0].mxu0 %v281
    %v414 = vpop.f32.mrb[0].mxu0
    %v415 = vadd.f32 %v102, %v414
    %v416 = vpop.f32.mrb[0].mxu0
    %v417 = vpop.f32.mrb[0].mxu0
    %v418 = vadd.f32 %v102, %v417
    %v419 = vpop.f32.mrb[0].mxu0
    %420 = vmatprep.mubr.bf16.mxu0 0
    %421 = vmatmul.mubr.bf16.gmra.mrb[0].mxu0 %v284
    %v422 = vpop.f32.mrb[0].mxu0
    %v423 = vadd.f32 %v102, %v422
    %v424 = vpop.f32.mrb[0].mxu0
    %v425 = vpop.f32.mrb[0].mxu0
    %v426 = vadd.f32 %v102, %v425
    %v427 = vpop.f32.mrb[0].mxu0
    %428 = vmatprep.mubr.bf16.mxu0 0
    %429 = vmatmul.mubr.bf16.gmra.mrb[0].mxu0 %v287
    %v430 = vpop.f32.mrb[0].mxu0
    %v431 = vadd.f32 %v102, %v430
    %v432 = vpop.f32.mrb[0].mxu0
    %v433 = vpop.f32.mrb[0].mxu0
    %v434 = vadd.f32 %v102, %v433
    %v435 = vpop.f32.mrb[0].mxu0
    %436 = vmatprep.mubr.bf16.mxu0 0
    %437 = vmatmul.mubr.bf16.gmra.mrb[0].mxu0 %v290
    %v438 = vpop.f32.mrb[0].mxu0
    %v439 = vadd.f32 %v102, %v438
    %v440 = vpop.f32.mrb[0].mxu0
    %v441 = vpop.f32.mrb[0].mxu0
    %v442 = vadd.f32 %v102, %v441
    %v443 = vpop.f32.mrb[0].mxu0
    %444 = vmatprep.mubr.bf16.mxu0 0
    %445 = vmatmul.mubr.bf16.gmra.mrb[0].mxu0 %v293
    %v446 = vpop.f32.mrb[0].mxu0
    %v447 = vadd.f32 %v102, %v446
    %v448 = vpop.f32.mrb[0].mxu0
    %v449 = vpop.f32.mrb[0].mxu0
    %v450 = vadd.f32 %v102, %v449
    %v451 = vpop.f32.mrb[0].mxu0
    %452 = vmatprep.mubr.bf16.mxu0 0
    %453 = vmatmul.mubr.bf16.gmra.mrb[0].mxu0 %v296
    %v454 = vpop.f32.mrb[0].mxu0
    %v455 = vadd.f32 %v102, %v454
    %v456 = vpop.f32.mrb[0].mxu0
    %v457 = vpop.f32.mrb[0].mxu0
    %v458 = vadd.f32 %v102, %v457
    %v459 = vpop.f32.mrb[0].mxu0
    %460 = vmatprep.mubr.bf16.mxu0 0
    %461 = vmatmul.mubr.bf16.gmra.mrb[0].mxu0 %v299
    %v462 = vpop.f32.mrb[0].mxu0
    %v463 = vadd.f32 %v102, %v462
    %v464 = vpop.f32.mrb[0].mxu0
    %v465 = vpop.f32.mrb[0].mxu0
    %v466 = vadd.f32 %v102, %v465
    %v467 = vpop.f32.mrb[0].mxu0
    %468 = vmatprep.mubr.bf16.mxu0 0
    %469 = vmatmul.mubr.bf16.gmra.mrb[0].mxu0 %v302
    %v470 = vpop.f32.mrb[0].mxu0
    %v471 = vadd.f32 %v102, %v470
    %v472 = vpop.f32.mrb[0].mxu0
    %v473 = vpop.f32.mrb[0].mxu0
    %v474 = vadd.f32 %v102, %v473
    %v475 = vpop.f32.mrb[0].mxu0
    %476 = vmatprep.mubr.bf16.mxu0 0
    %477 = vmatmul.mubr.bf16.gmra.mrb[0].mxu0 %v305
    %v478 = vpop.f32.mrb[0].mxu0
    %v479 = vadd.f32 %v102, %v478
    %v480 = vpop.f32.mrb[0].mxu0
    %v481 = vpop.f32.mrb[0].mxu0
    %v482 = vadd.f32 %v102, %v481
    %v483 = vpop.f32.mrb[0].mxu0
    %484 = vmatprep.mubr.bf16.mxu0 0
    %485 = vmatmul.mubr.bf16.gmra.mrb[0].mxu0 %v308
    %v486 = vpop.f32.mrb[0].mxu0
    %v487 = vadd.f32 %v102, %v486
    %v488 = vpop.f32.mrb[0].mxu0
    %v489 = vpop.f32.mrb[0].mxu0
    %v490 = vadd.f32 %v102, %v489
    %v491 = vpop.f32.mrb[0].mxu0
    %492 = vmatprep.mubr.bf16.mxu0 0
    %493 = vmatmul.mubr.bf16.gmra.mrb[0].mxu0 %v311
    %v494 = vpop.f32.mrb[0].mxu0
    %v495 = vadd.f32 %v102, %v494
    %v496 = vpop.f32.mrb[0].mxu0
    %v497 = vpop.f32.mrb[0].mxu0
    %v498 = vadd.f32 %v102, %v497
    %v499 = vpop.f32.mrb[0].mxu0
    %500 = vmatprep.mubr.bf16.mxu0 0
    %501 = vmatmul.mubr.bf16.gmra.mrb[0].mxu0 %v314
    %v502 = vpop.f32.mrb[0].mxu0
    %v503 = vadd.f32 %v102, %v502
    %v504 = vpop.f32.mrb[0].mxu0
    %v505 = vpop.f32.mrb[0].mxu0
    %v506 = vadd.f32 %v102, %v505
    %v507 = vpop.f32.mrb[0].mxu0
    %508 = vmatprep.mubr.bf16.mxu0 0
    %509 = vmatmul.mubr.bf16.gmra.mrb[0].mxu0 %v317
    %v510 = vpop.f32.mrb[0].mxu0
    %v511 = vadd.f32 %v102, %v510
    %v512 = vpop.f32.mrb[0].mxu0
    %v513 = vpop.f32.mrb[0].mxu0
    %v514 = vadd.f32 %v102, %v513
    %v515 = vpop.f32.mrb[0].mxu0
    %516 = vmatprep.mubr.bf16.mxu0 0
    %517 = vmatmul.mubr.bf16.gmra.mrb[0].mxu0 %v320
    %v518 = vpop.f32.mrb[0].mxu0
    %v519 = vadd.f32 %v102, %v518
    %v520 = vpop.f32.mrb[0].mxu0
    %v521 = vpop.f32.mrb[0].mxu0
    %v522 = vadd.f32 %v102, %v521
    %v523 = vpop.f32.mrb[0].mxu0
    %524 = vmatprep.mubr.bf16.mxu0 0
    %525 = vmatmul.mubr.bf16.gmra.mrb[0].mxu0 %v323
    %v526 = vpop.f32.mrb[0].mxu0
    %v527 = vadd.f32 %v102, %v526
    %v528 = vpop.f32.mrb[0].mxu0
    %v529 = vpop.f32.mrb[0].mxu0
    %v530 = vadd.f32 %v102, %v529
    %v531 = vpop.f32.mrb[0].mxu0
    %532 = vmatprep.mubr.bf16.mxu0 0
    %533 = vmatmul.mubr.bf16.gmra.mrb[0].mxu0 %v326
    %v534 = vpop.f32.mrb[0].mxu0
    %v535 = vadd.f32 %v102, %v534
    %v536 = vpop.f32.mrb[0].mxu0
    %v537 = vpop.f32.mrb[0].mxu0
    %v538 = vadd.f32 %v102, %v537
    %v539 = vpop.f32.mrb[0].mxu0
    %540 = vmatprep.mubr.bf16.mxu0 0
    %541 = vmatmul.mubr.bf16.gmra.mrb[0].mxu0 %v329
    %v542 = vpop.f32.mrb[0].mxu0
    %v543 = vadd.f32 %v102, %v542
    %v544 = vpop.f32.mrb[0].mxu0
    %v545 = vpop.f32.mrb[0].mxu0
    %v546 = vadd.f32 %v102, %v545
    %v547 = vpop.f32.mrb[0].mxu0
    %548 = vmatprep.mubr.bf16.mxu0 0
    %549 = vmatmul.mubr.bf16.gmra.mrb[0].mxu0 %v332
    %v550 = vpop.f32.mrb[0].mxu0
    %v551 = vadd.f32 %v102, %v550
    %v552 = vpop.f32.mrb[0].mxu0
    %v553 = vpop.f32.mrb[0].mxu0
    %v554 = vadd.f32 %v102, %v553
    %v555 = vpop.f32.mrb[0].mxu0
    %556 = vmatprep.mubr.bf16.mxu0 0
    %557 = vmatmul.mubr.bf16.gmra.mrb[0].mxu0 %v335
    %v558 = vpop.f32.mrb[0].mxu0
    %v559 = vadd.f32 %v102, %v558
    %v560 = vpop.f32.mrb[0].mxu0
    %v561 = vpop.f32.mrb[0].mxu0
    %v562 = vadd.f32 %v102, %v561
    %v563 = vpop.f32.mrb[0].mxu0
    %564 = vmatprep.mubr.bf16.mxu0 0
    %565 = vmatmul.mubr.bf16.gmra.mrb[0].mxu0 %v338
    %v566 = vpop.f32.mrb[0].mxu0
    %v567 = vadd.f32 %v102, %v566
    %v568 = vpop.f32.mrb[0].mxu0
    %v569 = vpop.f32.mrb[0].mxu0
    %v570 = vadd.f32 %v102, %v569
    %v571 = vpop.f32.mrb[0].mxu0
    %572 = vmatprep.mubr.bf16.mxu0 0
    %573 = vmatmul.mubr.bf16.gmra.mrb[0].mxu0 %v341
    %v574 = vpop.f32.mrb[0].mxu0
    %v575 = vadd.f32 %v102, %v574
    %v576 = vpop.f32.mrb[0].mxu0
    %v577 = vpop.f32.mrb[0].mxu0
    %v578 = vadd.f32 %v102, %v577
    %v579 = vpop.f32.mrb[0].mxu0
    %580 = vmatprep.mubr.bf16.mxu0 0
    %581 = vmatmul.mubr.bf16.gmra.mrb[0].mxu0 %v344
    %v582 = vpop.f32.mrb[0].mxu0
    %v583 = vadd.f32 %v102, %v582
    %v584 = vpop.f32.mrb[0].mxu0
    %v585 = vpop.f32.mrb[0].mxu0
    %v586 = vadd.f32 %v102, %v585
    %v587 = vpop.f32.mrb[0].mxu0
    %588 = vmatprep.mubr.bf16.mxu0 0
    %589 = vmatmul.mubr.bf16.gmra.mrb[0].mxu0 %v347
    %v590 = vpop.f32.mrb[0].mxu0
    %v591 = vadd.f32 %v102, %v590
    %v592 = vpop.f32.mrb[0].mxu0
    %v593 = vpop.f32.mrb[0].mxu0
    %v594 = vadd.f32 %v102, %v593
    %v595 = vpop.f32.mrb[0].mxu0
    %596 = vmatprep.mubr.bf16.mxu0 0
    %597 = vmatmul.mubr.bf16.gmra.mrb[0].mxu0 %v350
    %v598 = vpop.f32.mrb[0].mxu0
    %v599 = vadd.f32 %v102, %v598
    %v600 = vpop.f32.mrb[0].mxu0
    %v601 = vpop.f32.mrb[0].mxu0
    %v602 = vadd.f32 %v102, %v601
    %v603 = vpop.f32.mrb[0].mxu0
    %604 = vmatprep.mubr.bf16.mxu0 0
    %605 = vmatmul.mubr.bf16.gmra.mrb[0].mxu0 %v353
    %v606 = vpop.f32.mrb[0].mxu0
    %v607 = vadd.f32 %v102, %v606
    %v608 = vpop.f32.mrb[0].mxu0
    %v609 = vpop.f32.mrb[0].mxu0
    %v610 = vadd.f32 %v102, %v609
    %v611 = vpop.f32.mrb[0].mxu0
    %612 = vmatprep.mubr.bf16.mxu0 0
    %613 = vmatmul.mubr.bf16.gmra.mrb[0].mxu0 %v356
    %v614 = vpop.f32.mrb[0].mxu0
    %v615 = vadd.f32 %v102, %v614
    %v616 = vpop.f32.mrb[0].mxu0
    %v617 = vpop.f32.mrb[0].mxu0
    %v618 = vadd.f32 %v102, %v617
    %v619 = vpop.f32.mrb[0].mxu0
    %620 = vmatprep.mubr.bf16.mxu0 0
    %621 = vmatmul.mubr.bf16.gmra.mrb[0].mxu0 %v359
    %v622 = vpop.f32.mrb[0].mxu0
    %v623 = vadd.f32 %v102, %v622
    %v624 = vpop.f32.mrb[0].mxu0
    %v625 = vpop.f32.mrb[0].mxu0
    %v626 = vadd.f32 %v102, %v625
    %v627 = vpop.f32.mrb[0].mxu0
    %628 = vmatprep.mubr.bf16.mxu0 0
    %629 = vmatmul.mubr.bf16.gmra.mrb[0].mxu0 %v362
    %v630 = vpop.f32.mrb[0].mxu0
    %v631 = vadd.f32 %v102, %v630
    %v632 = vpop.f32.mrb[0].mxu0
    %v633 = vpop.f32.mrb[0].mxu0
    %v634 = vadd.f32 %v102, %v633
    %v635 = vpop.f32.mrb[0].mxu0
    %636 = vmatprep.mubr.bf16.mxu0 0
    %637 = vmatmul.mubr.bf16.gmra.mrb[0].mxu0 %v365
    %v638 = vpop.f32.mrb[0].mxu0
    %v639 = vadd.f32 %v102, %v638
    %v640 = vpop.f32.mrb[0].mxu0
    %v641 = vpop.f32.mrb[0].mxu0
    %v642 = vadd.f32 %v102, %v641
    %v643 = vpop.f32.mrb[0].mxu0
    %644 = vmatprep.mubr.bf16.mxu0 0
    %645 = vmatmul.mubr.bf16.gmra.mrb[0].mxu0 %v368
    %v646 = vpop.f32.mrb[0].mxu0
    %v647 = vadd.f32 %v102, %v646
    %v648 = vpop.f32.mrb[0].mxu0
    %v649 = vpop.f32.mrb[0].mxu0
    %v650 = vadd.f32 %v102, %v649
    %v651 = vpop.f32.mrb[0].mxu0
    %652 = vmatprep.mubr.bf16.mxu0 0
    %653 = vmatmul.mubr.bf16.gmra.mrb[0].mxu0 %v371
    %v654 = vpop.f32.mrb[0].mxu0
    %v655 = vadd.f32 %v102, %v654
    %v656 = vpop.f32.mrb[0].mxu0
    %v657 = vpop.f32.mrb[0].mxu0
    %v658 = vadd.f32 %v102, %v657
    %v659 = vpop.f32.mrb[0].mxu0
    %660 = vmatprep.mubr.bf16.mxu0 0
    %661 = vmatmul.mubr.bf16.gmra.mrb[0].mxu0 %v374
    %v662 = vpop.f32.mrb[0].mxu0
    %v663 = vadd.f32 %v102, %v662
    %v664 = vpop.f32.mrb[0].mxu0
    %v665 = vpop.f32.mrb[0].mxu0
    %v666 = vadd.f32 %v102, %v665
    %v667 = vpop.f32.mrb[0].mxu0
    %668 = vdwg.mxu0
    %v669 = vmax.f32 %v415, 0.0
    %v670 = vmax.f32 %v418, 0.0
    %v671 = vmax.f32 %v423, 0.0
    %v672 = vmax.f32 %v426, 0.0
    %v673 = vmax.f32 %v431, 0.0
    %v674 = vmax.f32 %v434, 0.0
    %v675 = vmax.f32 %v439, 0.0
    %v676 = vmax.f32 %v442, 0.0
    %v677 = vmax.f32 %v447, 0.0
    %v678 = vmax.f32 %v450, 0.0
    %v679 = vmax.f32 %v455, 0.0
    %v680 = vmax.f32 %v458, 0.0
    %v681 = vmax.f32 %v463, 0.0
    %v682 = vmax.f32 %v466, 0.0
    %v683 = vmax.f32 %v471, 0.0
    %v684 = vmax.f32 %v474, 0.0
    %v685 = vmax.f32 %v479, 0.0
    %v686 = vmax.f32 %v482, 0.0
    %v687 = vmax.f32 %v487, 0.0
    %v688 = vmax.f32 %v490, 0.0
    %v689 = vmax.f32 %v495, 0.0
    %v690 = vmax.f32 %v498, 0.0
    %v691 = vmax.f32 %v503, 0.0
    %v692 = vmax.f32 %v506, 0.0
    %v693 = vmax.f32 %v511, 0.0
    %v694 = vmax.f32 %v514, 0.0
    %v695 = vmax.f32 %v519, 0.0
    %v696 = vmax.f32 %v522, 0.0
    %v697 = vmax.f32 %v527, 0.0
    %v698 = vmax.f32 %v530, 0.0
    %v699 = vmax.f32 %v535, 0.0
    %v700 = vmax.f32 %v538, 0.0
    %v701 = vmax.f32 %v543, 0.0
    %v702 = vmax.f32 %v546, 0.0
    %v703 = vmax.f32 %v551, 0.0
    %v704 = vmax.f32 %v554, 0.0
    %v705 = vmax.f32 %v559, 0.0
    %v706 = vmax.f32 %v562, 0.0
    %v707 = vmax.f32 %v567, 0.0
    %v708 = vmax.f32 %v570, 0.0
    %v709 = vmax.f32 %v575, 0.0
    %v710 = vmax.f32 %v578, 0.0
    %v711 = vmax.f32 %v583, 0.0
    %v712 = vmax.f32 %v586, 0.0
    %v713 = vmax.f32 %v591, 0.0
    %v714 = vmax.f32 %v594, 0.0
    %v715 = vmax.f32 %v599, 0.0
    %v716 = vmax.f32 %v602, 0.0
    %v717 = vmax.f32 %v607, 0.0
    %v718 = vmax.f32 %v610, 0.0
    %v719 = vmax.f32 %v615, 0.0
    %v720 = vmax.f32 %v618, 0.0
    %v721 = vmax.f32 %v623, 0.0
    %v722 = vmax.f32 %v626, 0.0
    %v723 = vmax.f32 %v631, 0.0
    %v724 = vmax.f32 %v634, 0.0
    %v725 = vmax.f32 %v639, 0.0
    %v726 = vmax.f32 %v642, 0.0
    %v727 = vmax.f32 %v647, 0.0
    %v728 = vmax.f32 %v650, 0.0
    %v729 = vmax.f32 %v655, 0.0
    %v730 = vmax.f32 %v658, 0.0
    %v731 = vmax.f32 %v663, 0.0
    %v732 = vmax.f32 %v666, 0.0
    %v733 = vpack.c.bf16 %v670, %v669
    %v734 = vpack.c.bf16 %v672, %v671
    %v735 = vpack.c.bf16 %v674, %v673
    %v736 = vpack.c.bf16 %v676, %v675
    %v737 = vpack.c.bf16 %v678, %v677
    %v738 = vpack.c.bf16 %v680, %v679
    %v739 = vpack.c.bf16 %v682, %v681
    %v740 = vpack.c.bf16 %v684, %v683
    %v741 = vpack.c.bf16 %v686, %v685
    %v742 = vpack.c.bf16 %v688, %v687
    %v743 = vpack.c.bf16 %v690, %v689
    %v744 = vpack.c.bf16 %v692, %v691
    %v745 = vpack.c.bf16 %v694, %v693
    %v746 = vpack.c.bf16 %v696, %v695
    %v747 = vpack.c.bf16 %v698, %v697
    %v748 = vpack.c.bf16 %v700, %v699
    %v749 = vpack.c.bf16 %v702, %v701
    %v750 = vpack.c.bf16 %v704, %v703
    %v751 = vpack.c.bf16 %v706, %v705
    %v752 = vpack.c.bf16 %v708, %v707
    %v753 = vpack.c.bf16 %v710, %v709
    %v754 = vpack.c.bf16 %v712, %v711
    %v755 = vpack.c.bf16 %v714, %v713
    %v756 = vpack.c.bf16 %v716, %v715
    %v757 = vpack.c.bf16 %v718, %v717
    %v758 = vpack.c.bf16 %v720, %v719
    %v759 = vpack.c.bf16 %v722, %v721
    %v760 = vpack.c.bf16 %v724, %v723
    %v761 = vpack.c.bf16 %v726, %v725
    %v762 = vpack.c.bf16 %v728, %v727
    %v763 = vpack.c.bf16 %v730, %v729
    %v764 = vpack.c.bf16 %v732, %v731
    %v765 = vld [vmem:[%s3] sm:$0xff]
    %v766 = vld [vmem:[%s3 + $0x8] sm:$0xff]
    %v769 = vunpack.c.l.b16 %v765
    %v770 = vunpack.c.h.b16 %v765
    %v771 = vunpack.c.l.b16 %v766
    %v772 = vunpack.c.h.b16 %v766
    %v773 = vpack.c.b16 %v771, %v769
    %v774 = vpack.c.b16 %v772, %v770
    %777 = vmatprep.subr.bf16.mxu0 0
    %778 = vmatpush1.bf16.msra.mxu0 %v733
    %779 = vmatprep.subr.bf16.mxu0 0
    %780 = vmatpush1.bf16.msra.mxu0 %v734
    %781 = vmatprep.subr.bf16.mxu0 0
    %782 = vmatpush1.bf16.msra.mxu0 %v735
    %783 = vmatprep.subr.bf16.mxu0 0
    %784 = vmatpush1.bf16.msra.mxu0 %v736
    %785 = vmatprep.subr.bf16.mxu0 0
    %786 = vmatpush1.bf16.msra.mxu0 %v737
    %787 = vmatprep.subr.bf16.mxu0 0
    %788 = vmatpush1.bf16.msra.mxu0 %v738
    %789 = vmatprep.subr.bf16.mxu0 0
    %790 = vmatpush1.bf16.msra.mxu0 %v739
    %791 = vmatprep.subr.bf16.mxu0 0
    %792 = vmatpush1.bf16.msra.mxu0 %v740
    %793 = vmatprep.subr.bf16.mxu0 0
    %794 = vmatpush1.bf16.msra.mxu0 %v741
    %795 = vmatprep.subr.bf16.mxu0 0
    %796 = vmatpush1.bf16.msra.mxu0 %v742
    %797 = vmatprep.subr.bf16.mxu0 0
    %798 = vmatpush1.bf16.msra.mxu0 %v743
    %799 = vmatprep.subr.bf16.mxu0 0
    %800 = vmatpush1.bf16.msra.mxu0 %v744
    %801 = vmatprep.subr.bf16.mxu0 0
    %802 = vmatpush1.bf16.msra.mxu0 %v745
    %803 = vmatprep.subr.bf16.mxu0 0
    %804 = vmatpush1.bf16.msra.mxu0 %v746
    %805 = vmatprep.subr.bf16.mxu0 0
    %806 = vmatpush1.bf16.msra.mxu0 %v747
    %807 = vmatprep.subr.bf16.mxu0 0
    %808 = vmatpush1.bf16.msra.mxu0 %v748
    %809 = vmatprep.mubr.bf16.mxu0 %v774
    %810 = vmatmul.mubr.bf16.gmra.mrb[0].mxu0 %v773
    %v811 = vpop.f32.mrb[0].mxu0
    %v812 = vadd.f32 0.0, %v811
    %v813 = vpop.f32.mrb[0].mxu0
    %v814 = vpop.f32.mrb[0].mxu0
    %v815 = vadd.f32 0.0, %v814
    %v816 = vpop.f32.mrb[0].mxu0
    %817 = vdwg.mxu0
    %818 = vst [vmem:[#allocation2] sm:$0xff] %v812
    %819 = vst [vmem:[#allocation2 + $0x8] sm:$0xff] %v815
    %v820 = vadd.f32 %v812, %v815
    %v821 = vrot.slane %v820, 4
    %v822 = vadd.f32 %v820, %v821
    %v823 = vrot.slane %v822, 2
    %v824 = vadd.f32 %v822, %v823
    %v825 = vrot.slane %v824, 1
    %v826 = vadd.f32 %v824, %v825
    %v827 = vrcp.pop 16.0
    %v828 = vmul.f32 %v826, %v827
    %829 = vmatprep.subr.bf16.mxu0 0
    %830 = vmatpush1.bf16.msra.mxu0 %v749
    %831 = vmatprep.subr.bf16.mxu0 0
    %832 = vmatpush1.bf16.msra.mxu0 %v750
    %833 = vmatprep.subr.bf16.mxu0 0
    %834 = vmatpush1.bf16.msra.mxu0 %v751
    %835 = vmatprep.subr.bf16.mxu0 0
    %836 = vmatpush1.bf16.msra.mxu0 %v752
    %837 = vmatprep.subr.bf16.mxu0 0
    %838 = vmatpush1.bf16.msra.mxu0 %v753
    %839 = vmatprep.subr.bf16.mxu0 0
    %840 = vmatpush1.bf16.msra.mxu0 %v754
    %841 = vmatprep.subr.bf16.mxu0 0
    %842 = vmatpush1.bf16.msra.mxu0 %v755
    %843 = vmatprep.subr.bf16.mxu0 0
    %844 = vmatpush1.bf16.msra.mxu0 %v756
    %845 = vmatprep.subr.bf16.mxu0 0
    %846 = vmatpush1.bf16.msra.mxu0 %v757
    %847 = vmatprep.subr.bf16.mxu0 0
    %848 = vmatpush1.bf16.msra.mxu0 %v758
    %849 = vmatprep.subr.bf16.mxu0 0
    %850 = vmatpush1.bf16.msra.mxu0 %v759
    %851 = vmatprep.subr.bf16.mxu0 0
    %852 = vmatpush1.bf16.msra.mxu0 %v760
    %853 = vmatprep.subr.bf16.mxu0 0
    %854 = vmatpush1.bf16.msra.mxu0 %v761
    %855 = vmatprep.subr.bf16.mxu0 0
    %856 = vmatpush1.bf16.msra.mxu0 %v762
    %857 = vmatprep.subr.bf16.mxu0 0
    %858 = vmatpush1.bf16.msra.mxu0 %v763
    %859 = vmatprep.subr.bf16.mxu0 0
    %860 = vmatpush1.bf16.msra.mxu0 %v764
    %861 = vmatprep.mubr.bf16.mxu0 %v774
    %862 = vmatmul.mubr.bf16.gmra.mrb[0].mxu0 %v773
    %v863 = vpop.f32.mrb[0].mxu0
    %v864 = vadd.f32 0.0, %v863
    %v865 = vpop.f32.mrb[0].mxu0
    %v866 = vpop.f32.mrb[0].mxu0
    %v867 = vadd.f32 0.0, %v866
    %v868 = vpop.f32.mrb[0].mxu0
    %869 = vdwg.mxu0
    %s870 = scalar_lea.vmem [#allocation2], 16
    %871 = vst [vmem:[%s870] sm:$0xff] %v864
    %872 = vst [vmem:[%s870 + $0x8] sm:$0xff] %v867
    %v873 = vadd.f32 %v864, %v867
    %v874 = vrot.slane %v873, 4
    %v875 = vadd.f32 %v873, %v874
    %v876 = vrot.slane %v875, 2
    %v877 = vadd.f32 %v875, %v876
    %v878 = vrot.slane %v877, 1
    %v879 = vadd.f32 %v877, %v878
    %v880 = vmul.f32 %v879, %v827
    %vm881 = vcmask 1040384
    %v882 = vsel %vm881, %v828, %v880
    %v883 = vmul.f32 %v882, %v882
    %v884 = vsel %vm376, %v883, 0.0
    %885 = vadd.xlane.f32.xlu0 %v884
    %v886 = vpop.xlane.xlu0 %885
    %v887 = vadd.f32 %v886, 1e-08
    %v888 = vrsqrt.pop %v887
    %v889 = vmul.f32 %v882, %v888
    %v890 = vpack.c.bf16 %v889, %v889
    %v891 = vld [vmem:[%s4] sm:$0xf]
    %v892 = vld [vmem:[%s4 + $0x4] sm:$0xf]
    %v893 = vld [vmem:[%s4 + $0x8] sm:$0xf]
    %v894 = vld [vmem:[%s4 + $0xc] sm:$0xf]
    %v895 = vld [vmem:[%s4 + $0x10] sm:$0xf]
    %v896 = vld [vmem:[%s4 + $0x14] sm:$0xf]
    %v897 = vld [vmem:[%s4 + $0x18] sm:$0xf]
    %v898 = vld [vmem:[%s4 + $0x1c] sm:$0xf]
    %v899 = vld [vmem:[%s4 + $0x20] sm:$0xf]
    %v900 = vld [vmem:[%s4 + $0x24] sm:$0xf]
    %v901 = vld [vmem:[%s4 + $0x28] sm:$0xf]
    %v902 = vld [vmem:[%s4 + $0x2c] sm:$0xf]
    %v903 = vld [vmem:[%s4 + $0x30] sm:$0xf]
    %v904 = vld [vmem:[%s4 + $0x34] sm:$0xf]
    %v905 = vld [vmem:[%s4 + $0x38] sm:$0xf]
    %v906 = vld [vmem:[%s4 + $0x3c] sm:$0xf]
    %v907 = vld [vmem:[%s5] sm:$0x1]
    %v909 = vlaneseq
    %v910 = vshrl.u32 %v909, 7
    %v911 = vsub.s32 0, %v910
    %v912 = vrot.slane %v907, %v911
    %v930 = vunpack.c.l.b16 %v891
    %v931 = vunpack.c.l.b16 %v892
    %v932 = vunpack.c.l.b16 %v893
    %v933 = vunpack.c.l.b16 %v894
    %v934 = vunpack.c.l.b16 %v895
    %v935 = vunpack.c.l.b16 %v896
    %v936 = vunpack.c.l.b16 %v897
    %v937 = vunpack.c.l.b16 %v898
    %v938 = vunpack.c.l.b16 %v899
    %v939 = vunpack.c.l.b16 %v900
    %v940 = vunpack.c.l.b16 %v901
    %v941 = vunpack.c.l.b16 %v902
    %v942 = vunpack.c.l.b16 %v903
    %v943 = vunpack.c.l.b16 %v904
    %v944 = vunpack.c.l.b16 %v905
    %v945 = vunpack.c.l.b16 %v906
    %v946 = vpack.c.b16 %v931, %v930
    %v947 = vpack.c.b16 %v933, %v932
    %v948 = vpack.c.b16 %v935, %v934
    %v949 = vpack.c.b16 %v937, %v936
    %v950 = vpack.c.b16 %v939, %v938
    %v951 = vpack.c.b16 %v941, %v940
    %v952 = vpack.c.b16 %v943, %v942
    %v953 = vpack.c.b16 %v945, %v944
    %962 = vmatprep.subr.bf16.mxu0 0
    %963 = vmatpush1.bf16.msra.mxu0 %v946
    %964 = vmatprep.subr.bf16.mxu0 0
    %965 = vmatpush1.bf16.msra.mxu0 %v947
    %966 = vmatprep.subr.bf16.mxu0 0
    %967 = vmatpush1.bf16.msra.mxu0 %v948
    %968 = vmatprep.subr.bf16.mxu0 0
    %969 = vmatpush1.bf16.msra.mxu0 %v949
    %970 = vmatprep.subr.bf16.mxu0 0
    %971 = vmatpush1.bf16.msra.mxu0 %v950
    %972 = vmatprep.subr.bf16.mxu0 0
    %973 = vmatpush1.bf16.msra.mxu0 %v951
    %974 = vmatprep.subr.bf16.mxu0 0
    %975 = vmatpush1.bf16.msra.mxu0 %v952
    %976 = vmatprep.subr.bf16.mxu0 0
    %977 = vmatpush1.bf16.msra.mxu0 %v953
    %978 = vmatprep.subr.bf16.mxu0 0
    %979 = vmatpush1.bf16.msra.mxu0 0
    %980 = vmatprep.subr.bf16.mxu0 0
    %981 = vmatpush1.bf16.msra.mxu0 0
    %982 = vmatprep.subr.bf16.mxu0 0
    %983 = vmatpush1.bf16.msra.mxu0 0
    %984 = vmatprep.subr.bf16.mxu0 0
    %985 = vmatpush1.bf16.msra.mxu0 0
    %986 = vmatprep.subr.bf16.mxu0 0
    %987 = vmatpush1.bf16.msra.mxu0 0
    %988 = vmatprep.subr.bf16.mxu0 0
    %989 = vmatpush1.bf16.msra.mxu0 0
    %990 = vmatprep.subr.bf16.mxu0 0
    %991 = vmatpush1.bf16.msra.mxu0 0
    %992 = vmatprep.subr.bf16.mxu0 0
    %993 = vmatpush1.bf16.msra.mxu0 0
    %994 = vmatprep.mubr.bf16.mxu0 0
    %995 = vmatmul.mubr.bf16.gmra.mrb[0].mxu0 %v890
    %v996 = vpop.f32.mrb[0].mxu0
    %v997 = vadd.f32 %v912, %v996
    %v998 = vpop.f32.mrb[0].mxu0
    %v999 = vpop.f32.mrb[0].mxu0
    %v1000 = vpop.f32.mrb[0].mxu0
    %1001 = vdwg.mxu0
    %v1002 = vmul.f32 %v997, %v997
    %v1003 = vsel %vm376, %v1002, 0.0
    %1004 = vadd.xlane.f32.xlu0 %v1003
    %v1005 = vpop.xlane.xlu0 %1004
    %v1006 = vadd.f32 %v1005, 1e-08
    %v1007 = vrsqrt.pop %v1006
    %v1008 = vmul.f32 %v997, %v1007
    %1009 = vst [vmem:[#allocation4] sm:$0x1] %v1008
    %s1010 = scalar_lea.vmem [#allocation4], 1
    %1011 = vst [vmem:[%s1010 - $0x1] sm:$0x2] %v1008
    // Predicated region
    $region26: #{encoder_image_full.1} parent=1 // pred_check
      _
    $region27: #{encoder_image_full.1} parent=1 // pred_check_branch
      %1013 = sbr.rel (0) target = $region29
    $region28: #{encoder_image_full.1} parent=1 // pred_region
      %s1015 = ssub.s32 512, 512
      %1016 = vsyncadd [#allocation3], %s1015
      %s1017 = sshll.u32 [#allocation2], 4
      %s1018 = int_to_ptr.vmem [resolvable:$true] %s1017
      %1023 = dma.vmem_to_hbm [thread:$0]  %s1018, 512, %s6, [#allocation3], 128, 128, 8
    $region29: #{encoder_image_full.1} parent=1 // pred_fallthru
      _
    // Predicated region
    $region30: #{encoder_image_full.1} parent=1 // pred_check
      _
    $region31: #{encoder_image_full.1} parent=1 // pred_check_branch
      %1025 = sbr.rel (0) target = $region33
    $region32: #{encoder_image_full.1} parent=1 // pred_region
      %s1027 = ssub.s32 32, 32
      %1028 = vsyncadd [#allocation5], %s1027
      %s1029 = sshll.u32 [#allocation4], 4
      %s1030 = int_to_ptr.vmem [resolvable:$true] %s1029
      %1035 = dma.vmem_to_hbm [thread:$0]  %s1030, 32, %s7, [#allocation5], 16, 16, 1
    $region33: #{encoder_image_full.1} parent=1 // pred_fallthru
      _
    // Predicated region
    $region34: #{encoder_image_full.1} parent=1 // pred_check
      _
    $region35: #{encoder_image_full.1} parent=1 // pred_check_branch
      %1037 = sbr.rel (0) target = $region37
    $region36: #{encoder_image_full.1} parent=1 // pred_region
      %1038 = dma.done [#allocation3], 512
    $region37: #{encoder_image_full.1} parent=1 // pred_fallthru
      _
    // Predicated region
    $region38: #{encoder_image_full.1} parent=1 // pred_check
      _
    $region39: #{encoder_image_full.1} parent=1 // pred_check_branch
      %1040 = sbr.rel (0) target = $region41
    $region40: #{encoder_image_full.1} parent=1 // pred_region
      %1041 = dma.done [#allocation5], 32
    $region41: #{encoder_image_full.1} parent=1 // pred_fallthru
      _
    %1042 = vsyncpa [#allocation3], 1
    %1043 = vsyncpa [#allocation5], 1

</llo_original>
